<compile_context>
chip_gen: v7x
topology: tpu7x:2x2x1
jax: 0.10.0
libtpu: 0.0.40
codegen_flags: <defaults>
</compile_context>

<pallas_src>
import functools
import numpy as np
import jax
import jax.numpy as jnp
from jax.experimental import pallas as pl
from jax.experimental.pallas import tpu as pltpu


_VMEM_LIMIT = 56 * 1024 * 1024   # valid on v5e/v6e (128 MiB phys) and v7x (64 MiB phys)


def _row_tile(rows: int, target: int) -> int:
    """Row tile: full array if small, else `target` (multiple of 8); cdiv grid handles
    the partial last tile."""
    if rows <= target:
        return rows
    return target


# ----------------------------------------------------------------------------
# Kernel 1: fused Q/K/V projection  (one matmul, two lane-dense bf16 slabs)
# ----------------------------------------------------------------------------

def _qkv_kernel(x_ref, w_ref, b_ref, q_ref, kv_ref, *, dq):
    x = x_ref[...].astype(jnp.bfloat16)
    y = jnp.dot(x, w_ref[...], preferred_element_type=jnp.float32) + b_ref[...]
    q_ref[...] = y[:, :dq].astype(jnp.bfloat16)
    kv_ref[...] = y[:, dq:].astype(jnp.bfloat16)


def qkv_projection(x, w_qkv, b_qkv, dq):
    """x: (R, d_model) f32 -> q_slab: (R, dq) bf16, kv_slab: (R, dq+dv_tot) bf16."""
    R, d_in = x.shape
    d_tot = w_qkv.shape[1]
    rt = _row_tile(R, 512)
    return pl.pallas_call(
        functools.partial(_qkv_kernel, dq=dq),
        out_shape=(
            jax.ShapeDtypeStruct((R, dq), jnp.bfloat16),
            jax.ShapeDtypeStruct((R, d_tot - dq), jnp.bfloat16),
        ),
        grid=(pl.cdiv(R, rt),),
        in_specs=[
            pl.BlockSpec((rt, d_in), lambda i: (i, 0)),
            pl.BlockSpec((d_in, d_tot), lambda i: (0, 0)),
            pl.BlockSpec((1, d_tot), lambda i: (0, 0)),
        ],
        out_specs=(
            pl.BlockSpec((rt, dq), lambda i: (i, 0)),
            pl.BlockSpec((rt, d_tot - dq), lambda i: (i, 0)),
        ),
        compiler_params=pltpu.CompilerParams(
            dimension_semantics=("parallel",), vmem_limit_bytes=_VMEM_LIMIT),
    )(x, w_qkv, b_qkv.reshape(1, d_tot))


# ----------------------------------------------------------------------------
# Kernel 2: attention (+ tf-embedding bias) + fc + residual + LayerNorm1 + npm
#   grid=(B, ceil(L/tq)); heads unrolled; fc accumulated per head (no concat).
# ----------------------------------------------------------------------------

def _attn_fc_ln_kernel(q_ref, kv_ref, mask_ref, tf_ref, emb_ref, res_ref, npm_ref,
                       fcw_ref, fcb_ref, g_ref, be_ref, o_ref, attn_ref=None, *,
                       n_head, d_k, d_v, vocab, inv_temp, eps, return_attn):
    dq = n_head * d_k
    q2 = q_ref[0]                                   # (tq, H*d_k) bf16
    kv = kv_ref[0]                                  # (L, H*(d_k+d_v)) bf16
    masked = mask_ref[0].astype(jnp.float32) > 0.0  # (tq, L) bool, True = masked key
    tf_i = tf_ref[0]                                # (tq, L) int32, negative = no feature

    # vocab masks hoisted out of the head loop (shared by all heads)
    vmasks = [tf_i == v for v in range(vocab)]

    acc = None                                      # (tq, d_model) f32 fc accumulator
    for h in range(n_head):
        qh = q2[:, h * d_k:(h + 1) * d_k]
        kh = kv[:, h * d_k:(h + 1) * d_k]
        vh = kv[:, dq + h * d_v: dq + (h + 1) * d_v]

        # scores = q @ k^T  (contract feature dim; no explicit transpose), then /temp
        s = jax.lax.dot_general(qh, kh, (((1,), (1,)), ((), ())),
                                preferred_element_type=jnp.float32)      # (tq, L)
        s = s * inv_temp

        # tf label-embedding bias (pre-scaled by 1/temperature); masks are disjoint so
        # a select chain is exact: bias = emb[tf, h]/temp if tf >= 0 else 0.
        bias = 0.0
        for v in range(vocab):
            bias = jnp.where(vmasks[v], emb_ref[v, h] * inv_temp, bias)
        s = s + bias
        # finite "-inf" so fully-masked rows give a uniform row instead of NaN
        s = jnp.where(masked, -1e30, s)

        m = jnp.max(s, axis=-1, keepdims=True)
        e = jnp.exp(s - m)
        p = e / jnp.sum(e, axis=-1, keepdims=True)   # exact softmax (probs are returned)
        if return_attn and attn_ref is not None:
            attn_ref[h, 0] = p                       # dropout = identity (eval)

        # context for head h, immediately folded into the fc projection
        ctx = jnp.dot(p.astype(jnp.bfloat16), vh,
                      preferred_element_type=jnp.float32)                # (tq, d_v)
        y_h = jnp.dot(ctx.astype(jnp.bfloat16),
                      fcw_ref[h * d_v:(h + 1) * d_v, :],
                      preferred_element_type=jnp.float32)                # (tq, d_model)
        acc = y_h if acc is None else acc + y_h

    # fc bias + dropout(id) + residual + LayerNorm1, then *= non_pad_mask
    z = acc + fcb_ref[...] + res_ref[0]
    mean = jnp.mean(z, axis=-1, keepdims=True)
    var = jnp.mean(jnp.square(z - mean), axis=-1, keepdims=True)
    zn = (z - mean) * jax.lax.rsqrt(var + eps)
    o_ref[0] = (zn * g_ref[...] + be_ref[...]) * npm_ref[0]


def attention_fc_ln(q_slab, kv_slab, mask_i8, tf_i, tf_emb, enc_input, npm,
                    fc_w, fc_b, ln_g, ln_b, *, n_head, d_k, d_v, inv_temp,
                    eps=1e-5, return_attn=True):
    B, L, dq = q_slab.shape
    dkv = kv_slab.shape[-1]
    d_model = enc_input.shape[-1]
    V = tf_emb.shape[0]
    tq = L if L <= 256 else 256      # query-row tile; 256 keeps MXU M-width >= 256
    nq = pl.cdiv(L, tq)

    out_shape = [jax.ShapeDtypeStruct((B, L, d_model), jnp.float32)]
    out_specs = [pl.BlockSpec((1, tq, d_model), lambda b, i: (b, i, 0))]
    if return_attn:
        out_shape.append(jax.ShapeDtypeStruct((n_head, B, L, L), jnp.float32))
        out_specs.append(pl.BlockSpec((n_head, 1, tq, L), lambda b, i: (0, b, i, 0)))

    # TODO(synk): single-buffer the constant weight blocks (pipeline_mode=pl.Buffered(1)).
    res = pl.pallas_call(
        functools.partial(_attn_fc_ln_kernel, n_head=n_head, d_k=d_k, d_v=d_v,
                          vocab=V, inv_temp=inv_temp, eps=eps, return_attn=return_attn),
        out_shape=tuple(out_shape),
        grid=(B, nq),
        in_specs=[
            pl.BlockSpec((1, tq, dq), lambda b, i: (b, i, 0)),          # q (bf16)
            pl.BlockSpec((1, L, dkv), lambda b, i: (b, 0, 0)),          # k|v (bf16)
            pl.BlockSpec((1, tq, L), lambda b, i: (b, i, 0)),           # mask (int8)
            pl.BlockSpec((1, tq, L), lambda b, i: (b, i, 0)),           # tf labels (int32)
            pl.BlockSpec(memory_space=pltpu.MemorySpace.SMEM),          # tf_emb (V, H) f32
            pl.BlockSpec((1, tq, d_model), lambda b, i: (b, i, 0)),     # residual
            pl.BlockSpec((1, tq, 1), lambda b, i: (b, i, 0)),           # non_pad_mask
            pl.BlockSpec((n_head * d_v, d_model), lambda b, i: (0, 0)),  # fc_w (bf16)
            pl.BlockSpec((1, d_model), lambda b, i: (0, 0)),            # fc_b
            pl.BlockSpec((1, d_model), lambda b, i: (0, 0)),            # ln gamma
            pl.BlockSpec((1, d_model), lambda b, i: (0, 0)),            # ln beta
        ],
        out_specs=tuple(out_specs),
        compiler_params=pltpu.CompilerParams(
            dimension_semantics=("parallel", "arbitrary"),
            vmem_limit_bytes=_VMEM_LIMIT),
    )(q_slab, kv_slab, mask_i8, tf_i, tf_emb, enc_input, npm,
      fc_w, fc_b.reshape(1, d_model), ln_g.reshape(1, d_model), ln_b.reshape(1, d_model))

    if return_attn:
        return res[0], res[1]
    return (res[0] if isinstance(res, tuple) else res), None


# ----------------------------------------------------------------------------
# Kernel 3: fused FFN (w1 -> ReLU -> w2) + residual + LayerNorm2 + non_pad_mask
#   (Conv1d(k=1) == pointwise linear; hidden never touches HBM)
# ----------------------------------------------------------------------------

def _ffn_ln_kernel(x_ref, w1_ref, b1_ref, w2_ref, b2_ref, npm_ref, g_ref, be_ref,
                   o_ref, *, eps):
    x = x_ref[...]
    h = jnp.dot(x.astype(jnp.bfloat16), w1_ref[...],
                preferred_element_type=jnp.float32) + b1_ref[...]
    h = jnp.maximum(h, 0.0)
    y = jnp.dot(h.astype(jnp.bfloat16), w2_ref[...],
                preferred_element_type=jnp.float32) + b2_ref[...]
    z = y + x
    mean = jnp.mean(z, axis=-1, keepdims=True)
    var = jnp.mean(jnp.square(z - mean), axis=-1, keepdims=True)
    zn = (z - mean) * jax.lax.rsqrt(var + eps)
    o_ref[...] = (zn * g_ref[...] + be_ref[...]) * npm_ref[...]


def ffn_ln_residual(x, w1, b1, w2, b2, npm, gamma, beta, eps=1e-5):
    R, d_model = x.shape
    d_inner = w1.shape[1]
    rt = _row_tile(R, 256)
    # TODO(synk): K-tile over d_inner (streamed w1 cols / w2 rows + f32 accumulator)
    #             for v7x-scale d_inner; whole-weight blocks are fine at these sizes.
    return pl.pallas_call(
        functools.partial(_ffn_ln_kernel, eps=eps),
        out_shape=jax.ShapeDtypeStruct((R, d_model), jnp.float32),
        grid=(pl.cdiv(R, rt),),
        in_specs=[
            pl.BlockSpec((rt, d_model), lambda i: (i, 0)),
            pl.BlockSpec((d_model, d_inner), lambda i: (0, 0)),
            pl.BlockSpec((1, d_inner), lambda i: (0, 0)),
            pl.BlockSpec((d_inner, d_model), lambda i: (0, 0)),
            pl.BlockSpec((1, d_model), lambda i: (0, 0)),
            pl.BlockSpec((rt, 1), lambda i: (i, 0)),
            pl.BlockSpec((1, d_model), lambda i: (0, 0)),
            pl.BlockSpec((1, d_model), lambda i: (0, 0)),
        ],
        out_specs=pl.BlockSpec((rt, d_model), lambda i: (i, 0)),
        compiler_params=pltpu.CompilerParams(
            dimension_semantics=("parallel",), vmem_limit_bytes=_VMEM_LIMIT),
    )(x, w1, b1.reshape(1, d_inner), w2, b2.reshape(1, d_model), npm,
      gamma.reshape(1, d_model), beta.reshape(1, d_model))


# ----------------------------------------------------------------------------
# EncoderLayer forward
# ----------------------------------------------------------------------------

def encoder_layer(params, enc_input, non_pad_mask, slf_attn_mask, tf, *, return_attn=True):
    B, L, d_model = enc_input.shape
    H, d_k, d_v = params["n_head"], params["d_k"], params["d_v"]
    inv_temp = float(1.0 / np.power(d_k, 0.5))
    R = B * L
    dq = H * d_k

    x_flat = enc_input.reshape(R, d_model)

    # --- MultiHeadAttention: fused QKV projection (bf16 slabs to HBM) ---
    q_slab, kv_slab = qkv_projection(x_flat, params["w_qkv_w"], params["w_qkv_b"], dq)
    q_slab = q_slab.reshape(B, L, dq)
    kv_slab = kv_slab.reshape(B, L, H * (d_k + d_v))

    mask_i8 = (slf_attn_mask != 0).astype(jnp.int8)   # 1 = masked key
    tf_i = tf.astype(jnp.int32)                       # negative = no feature

    # attention + tf bias + fc + residual + LayerNorm1 + non_pad_mask (one kernel)
    x1, attn_p = attention_fc_ln(
        q_slab, kv_slab, mask_i8, tf_i, params["tf_emb"], enc_input, non_pad_mask,
        params["fc_w"], params["fc_b"], params["ln1_g"], params["ln1_b"],
        n_head=H, d_k=d_k, d_v=d_v, inv_temp=inv_temp, return_attn=return_attn)

    # --- PositionwiseFeedForward + residual + LayerNorm2 + non_pad_mask ---
    x2 = ffn_ln_residual(x1.reshape(R, d_model), params["w1_w"], params["w1_b"],
                         params["w2_w"], params["w2_b"], non_pad_mask.reshape(R, 1),
                         params["ln2_g"], params["ln2_b"])

    enc_output = x2.reshape(B, L, d_model)
    if return_attn:
        # head-major batch ordering, matches PyTorch's (n_head*sz_b, L, L) view
        return enc_output, attn_p.reshape(H * B, L, L)
    return enc_output, None


# ----------------------------------------------------------------------------
# Deterministic parameter init + example run
# ----------------------------------------------------------------------------

def init_params(key, d_model, d_inner, n_head, d_k, d_v, tf_vocab):
    ks = jax.random.split(key, 8)
    nrm = lambda k, shape, std: jax.random.normal(k, shape, jnp.float32) * std
    std_qk = float(np.sqrt(2.0 / (d_model + d_k)))
    std_v = float(np.sqrt(2.0 / (d_model + d_v)))
    w_qs = nrm(ks[0], (d_model, n_head * d_k), std_qk)
    w_ks = nrm(ks[1], (d_model, n_head * d_k), std_qk)
    w_vs = nrm(ks[2], (d_model, n_head * d_v), std_v)
    return {
        "n_head": n_head, "d_k": d_k, "d_v": d_v,
        # fused QKV projection, pre-transposed (Din, Dout) and pre-cast to bf16
        "w_qkv_w": jnp.concatenate([w_qs, w_ks, w_vs], axis=1).astype(jnp.bfloat16),
        "w_qkv_b": jnp.zeros((n_head * (2 * d_k + d_v),), jnp.float32),
        "fc_w": nrm(ks[3], (n_head * d_v, d_model), 0.05).astype(jnp.bfloat16),
        "fc_b": jnp.zeros((d_model,), jnp.float32),
        "tf_emb": nrm(ks[4], (tf_vocab, n_head), 1.0),
        "ln1_g": jnp.ones((d_model,), jnp.float32),
        "ln1_b": jnp.zeros((d_model,), jnp.float32),
        # Conv1d(k=1) weights as (Din, Dout) pointwise-linear matrices, bf16
        "w1_w": nrm(ks[5], (d_model, d_inner), 0.05).astype(jnp.bfloat16),
        "w1_b": jnp.zeros((d_inner,), jnp.float32),
        "w2_w": nrm(ks[6], (d_inner, d_model), 0.05).astype(jnp.bfloat16),
        "w2_b": jnp.zeros((d_model,), jnp.float32),
        "ln2_g": jnp.ones((d_model,), jnp.float32),
        "ln2_b": jnp.zeros((d_model,), jnp.float32),
    }


if __name__ == "__main__":
    B, L = 2, 8
    d_model, d_inner, n_head, d_k, d_v = 32, 64, 4, 8, 8
    tf_vocab = 5

    key = jax.random.PRNGKey(0)
    k_param, k_x, k_tf = jax.random.split(key, 3)
    params = init_params(k_param, d_model, d_inner, n_head, d_k, d_v, tf_vocab)

    enc_input = jax.random.normal(k_x, (B, L, d_model), jnp.float32)

    # padding: batch 1 has its last 2 tokens padded
    pad = jnp.array([[0] * L, [0] * (L - 2) + [1] * 2], dtype=jnp.float32)  # (B,L)
    non_pad_mask = (1.0 - pad)[..., None]                                   # (B,L,1)
    slf_attn_mask = jnp.broadcast_to(pad[:, None, :], (B, L, L))            # 1 = masked key

    # tf labels in [-1, tf_vocab); -1 means "no feature"
    tf = jax.random.randint(k_tf, (B, L, L), -1, tf_vocab).astype(jnp.int32)

    enc_output, enc_slf_attn = encoder_layer(
        params, enc_input, non_pad_mask, slf_attn_mask, tf)
    jax.block_until_ready((enc_output, enc_slf_attn))

    assert enc_output.shape == (B, L, d_model)
    assert enc_slf_attn.shape == (n_head * B, L, L)
    assert bool(jnp.isfinite(enc_output).all())
    assert bool(jnp.isfinite(enc_slf_attn).all())
    assert bool(jnp.allclose(enc_slf_attn.sum(-1), 1.0, atol=1e-3))
    print("KERNEL_OK")
</pallas_src>

<mosaic_0001>
module attributes {stable_mosaic.version = 11 : i64} {
  func.func @_qkv_kernel(%arg0: i32, %arg1: memref<16x32xf32, #tpu.memory_space<vmem>>, %arg2: memref<32x96xbf16, #tpu.memory_space<vmem>>, %arg3: memref<1x96xf32, #tpu.memory_space<vmem>>, %arg4: memref<16x32xbf16, #tpu.memory_space<vmem>>, %arg5: memref<16x64xbf16, #tpu.memory_space<vmem>>) attributes {dimension_semantics = [#tpu.dimension_semantics<parallel>], iteration_bounds = array<i64: 1>, scalar_prefetch = 0 : i64, scratch_operands = 0 : i64, tpu.core_type = #tpu.core_type<tc>, window_params = [{transform_indices = @transform_0, window_bounds = array<i64: 16, 32>}, {pipeline_mode = #tpu.pipeline_mode<synchronous>, transform_indices = @transform_1, window_bounds = array<i64: 32, 96>}, {pipeline_mode = #tpu.pipeline_mode<synchronous>, transform_indices = @transform_2, window_bounds = array<i64: 1, 96>}, {transform_indices = @transform_3, window_bounds = array<i64: 16, 32>}, {transform_indices = @transform_4, window_bounds = array<i64: 16, 64>}]} {
    %c0 = arith.constant 0 : index
    %c0_0 = arith.constant 0 : index
    %0 = vector.load %arg1[%c0, %c0_0] : memref<16x32xf32, #tpu.memory_space<vmem>>, vector<16x32xf32>
    %1 = arith.truncf %0 : vector<16x32xf32> to vector<16x32xbf16>
    %c0_1 = arith.constant 0 : index
    %c0_2 = arith.constant 0 : index
    %2 = vector.load %arg2[%c0_1, %c0_2] : memref<32x96xbf16, #tpu.memory_space<vmem>>, vector<32x96xbf16>
    %cst = arith.constant dense<0.000000e+00> : vector<16x96xf32>
    %3 = tpu.matmul %1, %2, %cst {dimension_numbers = #tpu.dot_dimension_numbers<[1], [0], [0], [1], [0, 0, 1, 1], [], []>} : vector<16x32xbf16>, vector<32x96xbf16>, vector<16x96xf32> -> vector<16x96xf32>
    %c0_3 = arith.constant 0 : index
    %c0_4 = arith.constant 0 : index
    %4 = vector.load %arg3[%c0_3, %c0_4] : memref<1x96xf32, #tpu.memory_space<vmem>>, vector<1x96xf32>
    %5 = vector.broadcast %4 : vector<1x96xf32> to vector<16x96xf32>
    %6 = arith.addf %3, %5 : vector<16x96xf32>
    %7 = vector.extract_strided_slice %6 {offsets = [0, 0], sizes = [16, 32], strides = [1, 1]} : vector<16x96xf32> to vector<16x32xf32>
    %8 = arith.truncf %7 : vector<16x32xf32> to vector<16x32xbf16>
    %c0_5 = arith.constant 0 : index
    %c0_6 = arith.constant 0 : index
    %9 = vector.load %arg4[%c0_5, %c0_6] : memref<16x32xbf16, #tpu.memory_space<vmem>>, vector<16x32xbf16>
    tpu.vector_store %arg4[%c0_5, %c0_6], %8 {strides = array<i32>} : memref<16x32xbf16, #tpu.memory_space<vmem>>, vector<16x32xbf16>,
    %10 = vector.extract_strided_slice %6 {offsets = [0, 32], sizes = [16, 64], strides = [1, 1]} : vector<16x96xf32> to vector<16x64xf32>
    %11 = arith.truncf %10 : vector<16x64xf32> to vector<16x64xbf16>
    %c0_7 = arith.constant 0 : index
    %c0_8 = arith.constant 0 : index
    %12 = vector.load %arg5[%c0_7, %c0_8] : memref<16x64xbf16, #tpu.memory_space<vmem>>, vector<16x64xbf16>
    tpu.vector_store %arg5[%c0_7, %c0_8], %11 {strides = array<i32>} : memref<16x64xbf16, #tpu.memory_space<vmem>>, vector<16x64xbf16>,
    return
  }
  func.func @transform_0(%arg0: i32) -> (i32, i32) {
    %c0_i32 = arith.constant 0 : i32
    %c0_i32_0 = arith.constant 0 : i32
    return %arg0, %c0_i32 : i32, i32
  }
  func.func @transform_1(%arg0: i32) -> (i32, i32) {
    %c0_i32 = arith.constant 0 : i32
    %c0_i32_0 = arith.constant 0 : i32
    %c0_i32_1 = arith.constant 0 : i32
    return %c0_i32, %c0_i32_0 : i32, i32
  }
  func.func @transform_2(%arg0: i32) -> (i32, i32) {
    %c0_i32 = arith.constant 0 : i32
    %c0_i32_0 = arith.constant 0 : i32
    %c0_i32_1 = arith.constant 0 : i32
    return %c0_i32, %c0_i32_0 : i32, i32
  }
  func.func @transform_3(%arg0: i32) -> (i32, i32) {
    %c0_i32 = arith.constant 0 : i32
    %c0_i32_0 = arith.constant 0 : i32
    return %arg0, %c0_i32 : i32, i32
  }
  func.func @transform_4(%arg0: i32) -> (i32, i32) {
    %c0_i32 = arith.constant 0 : i32
    %c0_i32_0 = arith.constant 0 : i32
    return %arg0, %c0_i32 : i32, i32
  }
}

</mosaic_0001>

<llo_original>
// kernel: tpu_custom_call.1
$region0: #{tpu_custom_call.1}
  #allocation0 [shape = 'u32[]', space=smem, size = 0x4, offset = 0x4, fixed_abs, tag = 'smem constant byte address 0x4 - core index']
  #allocation1 [shape = 'u32[144,128]{1,0:T(1,128)}', space=vmem, size = 0x12000, scoped, tag = 'internal scratch']
  %s0 = inlined_call_operand.hbm [shape: f32[16,32], index: 0, kind: input, shape index: {}]
  %s1 = inlined_call_operand.hbm [shape: bf16[32,96], index: 1, kind: input, shape index: {}]
  %s2 = inlined_call_operand.vmem [shape: f32[1,96], index: 2, kind: input, shape index: {}]
  %s3 = inlined_call_operand.hbm [shape: bf16[16,32], index: 3, kind: output, shape index: {0}]
  %s4 = inlined_call_operand.hbm [shape: bf16[16,64], index: 4, kind: output, shape index: {1}]
  %5 = xla_tuple %s3, %s4
  %s6 = sld [smem:[#allocation0]]
  $region38: #{tpu_custom_call.1} parent=0
    _
  %s8 = ssub.s32 1, %s6
  %s9 = scalar_select 0, %s8, %s6
  $region1: #{tpu_custom_call.1} parent=0
    #allocation2 [shape = 'u8[8192]{0}', space=vmem, size = 0x2000, scoped, tag = 'input window, operand 0, single buffered']
    #allocation3 [shape = 's32[1]{0}', space=sflag, size = 0x4, scoped, tag = 'scoped memory for tpu_custom_call.1']
    #allocation4 [shape = 's32[1]{0}', space=sflag, size = 0x4, scoped, tag = 'scoped memory for tpu_custom_call.1']
    #allocation5 [shape = 'u8[8192]{0}', space=vmem, size = 0x2000, scoped, tag = 'input window, operand 1, single buffered']
    #allocation6 [shape = 's32[1]{0}', space=sflag, size = 0x4, scoped, tag = 'scoped memory for tpu_custom_call.1']
    #allocation7 [shape = 'u8[4096]{0}', space=vmem, size = 0x1000, scoped, tag = 'output window, operand 0, single buffered']
    #allocation8 [shape = 'u8[4096]{0}', space=vmem, size = 0x1000, scoped, tag = 'output window, operand 1, single buffered']
    #allocation9 [shape = 's32[1]{0}', space=sflag, size = 0x4, scoped, tag = 'scoped memory for tpu_custom_call.1']
    %10 = vsyncpa [#allocation3], 0
    %11 = vsyncpa [#allocation6], 0
    %12 = vsyncpa [#allocation4], 0
    %13 = vsyncpa [#allocation9], 0
    // Predicated region
    $region2: #{tpu_custom_call.1} parent=1 // pred_check
      _
    $region3: #{tpu_custom_call.1} parent=1 // pred_check_branch
      %15 = sbr.rel (0) target = $region5
    $region4: #{tpu_custom_call.1} parent=1 // pred_region
      %s17 = ssub.s32 256, 256
      %18 = vsyncadd [#allocation3], %s17
      %s19 = sshll.u32 [#allocation2], 4
      %s20 = int_to_ptr.vmem [resolvable:$true] %s19
      %25 = dma.hbm_to_vmem [thread:$0]  %s0, 256, %s20, [#allocation3], 128, 128, 8
    $region5: #{tpu_custom_call.1} parent=1 // pred_fallthru
      _
    // Predicated region
    $region6: #{tpu_custom_call.1} parent=1 // pred_check
      _
    $region7: #{tpu_custom_call.1} parent=1 // pred_check_branch
      %27 = sbr.rel (0) target = $region9
    $region8: #{tpu_custom_call.1} parent=1 // pred_region
      %s29 = ssub.s32 256, 256
      %30 = vsyncadd [#allocation6], %s29
      %s31 = sshll.u32 [#allocation5], 4
      %s32 = int_to_ptr.vmem [resolvable:$true] %s31
      %37 = dma.hbm_to_vmem [thread:$0]  %s1, 256, %s32, [#allocation6], 64, 64, 4
    $region9: #{tpu_custom_call.1} parent=1 // pred_fallthru
      _
    // Predicated region
    $region10: #{tpu_custom_call.1} parent=1 // pred_check
      _
    $region11: #{tpu_custom_call.1} parent=1 // pred_check_branch
      %39 = sbr.rel (0) target = $region13
    $region12: #{tpu_custom_call.1} parent=1 // pred_region
      _
    $region13: #{tpu_custom_call.1} parent=1 // pred_fallthru
      _
    // Predicated region
    $region14: #{tpu_custom_call.1} parent=1 // pred_check
      _
    $region15: #{tpu_custom_call.1} parent=1 // pred_check_branch
      %41 = sbr.rel (0) target = $region17
    $region16: #{tpu_custom_call.1} parent=1 // pred_region
      %42 = dma.done [#allocation3], 256
    $region17: #{tpu_custom_call.1} parent=1 // pred_fallthru
      _
    // Predicated region
    $region18: #{tpu_custom_call.1} parent=1 // pred_check
      _
    $region19: #{tpu_custom_call.1} parent=1 // pred_check_branch
      %44 = sbr.rel (0) target = $region21
    $region20: #{tpu_custom_call.1} parent=1 // pred_region
      %45 = dma.done [#allocation6], 256
    $region21: #{tpu_custom_call.1} parent=1 // pred_fallthru
      _
    %v47 = vld [vmem:[#allocation2] sm:$0xff]
    %v48 = vld [vmem:[#allocation2 + $0x8] sm:$0xff]
    %v49 = vpack.c.bf16 %v48, %v47
    %v50 = vld [vmem:[#allocation5] sm:$0xf]
    %v51 = vld [vmem:[#allocation5 + $0x4] sm:$0xf]
    %v52 = vld [vmem:[#allocation5 + $0x8] sm:$0xf]
    %v53 = vld [vmem:[#allocation5 + $0xc] sm:$0xf]
    %v54 = vld [vmem:[%s2] sm:$0x1]
    %v56 = vlaneseq
    %v57 = vshrl.u32 %v56, 7
    %v58 = vsub.s32 0, %v57
    %v59 = vrot.slane %v54, %v58
    %v65 = vunpack.c.l.b16 %v50
    %v66 = vunpack.c.l.b16 %v51
    %v67 = vunpack.c.l.b16 %v52
    %v68 = vunpack.c.l.b16 %v53
    %v69 = vpack.c.b16 %v66, %v65
    %v70 = vpack.c.b16 %v68, %v67
    %vm73 = vcmask 261120
    %v75 = vsel %vm73, %v49, 0
    %77 = vmatprep.subr.bf16.mxu0 0
    %78 = vmatpush1.bf16.msra.mxu0 %v69
    %79 = vmatprep.subr.bf16.mxu0 0
    %80 = vmatpush1.bf16.msra.mxu0 %v70
    %81 = vmatprep.subr.bf16.mxu0 0
    %82 = vmatpush1.bf16.msra.mxu0 0
    %83 = vmatprep.subr.bf16.mxu0 0
    %84 = vmatpush1.bf16.msra.mxu0 0
    %85 = vmatprep.subr.bf16.mxu0 0
    %86 = vmatpush1.bf16.msra.mxu0 0
    %87 = vmatprep.subr.bf16.mxu0 0
    %88 = vmatpush1.bf16.msra.mxu0 0
    %89 = vmatprep.subr.bf16.mxu0 0
    %90 = vmatpush1.bf16.msra.mxu0 0
    %91 = vmatprep.subr.bf16.mxu0 0
    %92 = vmatpush1.bf16.msra.mxu0 0
    %93 = vmatprep.subr.bf16.mxu0 0
    %94 = vmatpush1.bf16.msra.mxu0 0
    %95 = vmatprep.subr.bf16.mxu0 0
    %96 = vmatpush1.bf16.msra.mxu0 0
    %97 = vmatprep.subr.bf16.mxu0 0
    %98 = vmatpush1.bf16.msra.mxu0 0
    %99 = vmatprep.subr.bf16.mxu0 0
    %100 = vmatpush1.bf16.msra.mxu0 0
    %101 = vmatprep.subr.bf16.mxu0 0
    %102 = vmatpush1.bf16.msra.mxu0 0
    %103 = vmatprep.subr.bf16.mxu0 0
    %104 = vmatpush1.bf16.msra.mxu0 0
    %105 = vmatprep.subr.bf16.mxu0 0
    %106 = vmatpush1.bf16.msra.mxu0 0
    %107 = vmatprep.subr.bf16.mxu0 0
    %108 = vmatpush1.bf16.msra.mxu0 0
    %109 = vmatprep.mubr.bf16.mxu0 0
    %110 = vmatmul.mubr.bf16.gmra.mrb[0].mxu0 %v75
    %v111 = vpop.f32.mrb[0].mxu0
    %v112 = vadd.f32 %v59, %v111
    %v113 = vpop.f32.mrb[0].mxu0
    %v114 = vpop.f32.mrb[0].mxu0
    %v115 = vadd.f32 %v59, %v114
    %v116 = vpop.f32.mrb[0].mxu0
    %117 = vdwg.mxu0
    %v118 = vpack.c.bf16 %v115, %v112
    %v120 = vunpack.c.l.b16 %v118
    %v121 = vunpack.c.h.b16 %v118
    %v122 = vpack.c.b16 %v120, %v120
    %v123 = vpack.c.b16 %v121, %v121
    %vm126 = vcmask 257024
    %127 = vst.msk [vmem:[#allocation7] sm:$0xf] %vm126, %v122
    %128 = vst.msk [vmem:[#allocation7 + $0x4] sm:$0xf] %vm126, %v123
    %129 = vrot.lane.b32.xlu0 %v122, 96
    %v130 = vpop.permute.xlu0 %129
    %131 = vrot.lane.b32.xlu0 %v123, 96
    %v132 = vpop.permute.xlu0 %131
    %vm135 = vcmask 519168
    %136 = vst.msk [vmem:[#allocation8] sm:$0xf] %vm135, %v130
    %137 = vst.msk [vmem:[#allocation8 + $0x4] sm:$0xf] %vm135, %v132
    // Predicated region
    $region22: #{tpu_custom_call.1} parent=1 // pred_check
      _
    $region23: #{tpu_custom_call.1} parent=1 // pred_check_branch
      %139 = sbr.rel (0) target = $region25
    $region24: #{tpu_custom_call.1} parent=1 // pred_region
      %s141 = ssub.s32 128, 128
      %142 = vsyncadd [#allocation4], %s141
      %s143 = sshll.u32 [#allocation7], 4
      %s144 = int_to_ptr.vmem [resolvable:$true] %s143
      %149 = dma.vmem_to_hbm [thread:$0]  %s144, 128, %s3, [#allocation4], 64, 64, 4
    $region25: #{tpu_custom_call.1} parent=1 // pred_fallthru
      _
    // Predicated region
    $region26: #{tpu_custom_call.1} parent=1 // pred_check
      _
    $region27: #{tpu_custom_call.1} parent=1 // pred_check_branch
      %151 = sbr.rel (0) target = $region29
    $region28: #{tpu_custom_call.1} parent=1 // pred_region
      %s153 = ssub.s32 128, 128
      %154 = vsyncadd [#allocation9], %s153
      %s155 = sshll.u32 [#allocation8], 4
      %s156 = int_to_ptr.vmem [resolvable:$true] %s155
      %161 = dma.vmem_to_hbm [thread:$0]  %s156, 128, %s4, [#allocation9], 64, 64, 4
    $region29: #{tpu_custom_call.1} parent=1 // pred_fallthru
      _
    // Predicated region
    $region30: #{tpu_custom_call.1} parent=1 // pred_check
      _
    $region31: #{tpu_custom_call.1} parent=1 // pred_check_branch
      %163 = sbr.rel (0) target = $region33
    $region32: #{tpu_custom_call.1} parent=1 // pred_region
      %164 = dma.done [#allocation4], 128
    $region33: #{tpu_custom_call.1} parent=1 // pred_fallthru
      _
    // Predicated region
    $region34: #{tpu_custom_call.1} parent=1 // pred_check
      _
    $region35: #{tpu_custom_call.1} parent=1 // pred_check_branch
      %166 = sbr.rel (0) target = $region37
    $region36: #{tpu_custom_call.1} parent=1 // pred_region
      %167 = dma.done [#allocation9], 128
    $region37: #{tpu_custom_call.1} parent=1 // pred_fallthru
      _
    %168 = vsyncpa [#allocation3], 1
    %169 = vsyncpa [#allocation6], 1
    %170 = vsyncpa [#allocation4], 1
    %171 = vsyncpa [#allocation9], 1

</llo_original>
